<compile_context>
chip_gen: v6e
topology: v6e:2x2x1
jax: 0.10.0
libtpu: 0.0.40
codegen_flags: <defaults>
</compile_context>

<pallas_src>
import jax
import jax.numpy as jnp
from jax.experimental import pallas as pl
from jax.experimental.pallas import tpu as pltpu


def mlp_kernel(x_ref, w1_ref, b1_ref, w2_ref, b2_ref, w3_ref, b3_ref, o_ref):
    # Operand (MXU) dtype follows the pre-cast weights; accumulation is f32.
    cd = w1_ref.dtype
    x = x_ref[...].astype(cd)            # in-kernel cast (no wrapper-side op)
    # fc1 + ReLU
    h1 = jnp.dot(x, w1_ref[...], preferred_element_type=jnp.float32)
    h1 = jnp.maximum(h1 + b1_ref[...], 0.0).astype(cd)
    # fc2 + ReLU
    h2 = jnp.dot(h1, w2_ref[...], preferred_element_type=jnp.float32)
    h2 = jnp.maximum(h2 + b2_ref[...], 0.0).astype(cd)
    # output layer (Q-values, no activation)
    out = jnp.dot(h2, w3_ref[...], preferred_element_type=jnp.float32)
    o_ref[...] = (out + b3_ref[...]).astype(o_ref.dtype)


def _round_up(x, m):
    return ((x + m - 1) // m) * m


def prepare_params(params, compute_dtype=jnp.float32):
    """One-time parameter preprocessing (hoisted out of the forward path).

    Casts weights to the MXU operand dtype (f32 keeps exact reference
    semantics; bf16 is the fast native route on v6e/v7x). Biases stay f32 so
    the f32 accumulators add at full precision.
    """
    return {
        "w1": params["w1"].astype(compute_dtype),
        "b1": params["b1"].astype(jnp.float32),
        "w2": params["w2"].astype(compute_dtype),
        "b2": params["b2"].astype(jnp.float32),
        "w3": params["w3"].astype(compute_dtype),
        "b3": params["b3"].astype(jnp.float32),
    }


def network_forward(x, params, *, tb=None):
    """Fused forward pass of the DDQN Network — a single pallas_call.

    x: [B, in_dim] float32
    params: output of prepare_params (w* [fan_in, fan_out], b* [1, fan_out])
    returns: [B, out_dim] float32
    """
    w1, b1 = params["w1"], params["b1"]
    w2, b2 = params["w2"], params["b2"]
    w3, b3 = params["w3"], params["b3"]

    B, in_dim = x.shape
    out_dim = w3.shape[1]

    # Default: one 8-row-aligned block per call (grid=(1,)) — per-grid-step
    # overhead dominates this tiny MLP on single-TC chips. The working set is
    # tens of KiB, nowhere near any generation's VMEM limit, so the cap only
    # matters for very large replay batches.
    if tb is None:
        tb = min(_round_up(B, 8), 4096)
    n_blocks = pl.cdiv(B, tb)

    # Weights / biases: single full-extent block, VMEM-resident across steps.
    resident = lambda a: pl.BlockSpec(a.shape, lambda i: (0,) * a.ndim)

    return pl.pallas_call(
        mlp_kernel,
        out_shape=jax.ShapeDtypeStruct((B, out_dim), jnp.float32),
        grid=(n_blocks,),
        in_specs=[
            pl.BlockSpec((tb, in_dim), lambda i: (i, 0)),   # x: blocked on batch
            resident(w1), resident(b1),
            resident(w2), resident(b2),
            resident(w3), resident(b3),
        ],
        # out_dim (=4) equals the full array extent -> legal block; accept the
        # masked 4-lane store instead of 32x padded writeback + slice.
        out_specs=pl.BlockSpec((tb, out_dim), lambda i: (i, 0)),
        compiler_params=pltpu.CompilerParams(
            dimension_semantics=("parallel",)),  # v7x: split batch over 2 TCs
    )(x, w1, b1, w2, b2, w3, b3)


def init_params(key, in_dim, fc1_dims, fc2_dims, out_dim):
    """Deterministic init mimicking nn.Linear default (uniform +-1/sqrt(fan_in))."""
    ks = jax.random.split(key, 6)

    def lin(kw, kb, fan_in, fan_out):
        bound = 1.0 / jnp.sqrt(jnp.float32(fan_in))
        w = jax.random.uniform(kw, (fan_in, fan_out), jnp.float32, -bound, bound)
        b = jax.random.uniform(kb, (1, fan_out), jnp.float32, -bound, bound)
        return w, b

    w1, b1 = lin(ks[0], ks[1], in_dim, fc1_dims)
    w2, b2 = lin(ks[2], ks[3], fc1_dims, fc2_dims)
    w3, b3 = lin(ks[4], ks[5], fc2_dims, out_dim)
    return {"w1": w1, "b1": b1, "w2": w2, "b2": b2, "w3": w3, "b3": b3}


# TODO(synk): save_checkpoint / load_checkpoint are host-side file I/O with no
# Pallas equivalent; handle parameter persistence outside the kernel.
# TODO(synk): in the DDQN loop, stacking online+target network params on a
# leading axis and evaluating both in one pallas_call would halve launch count.


if __name__ == "__main__":
    # DDQN attitude-control-style dims: obs=8, two hidden layers of 32, 4 actions.
    B, in_dim, fc1_dims, fc2_dims, out_dim = 300, 8, 32, 32, 4

    key = jax.random.PRNGKey(0)
    k_x, k_p = jax.random.split(key)
    x = jax.random.normal(k_x, (B, in_dim), jnp.float32)
    params = init_params(k_p, in_dim, fc1_dims, fc2_dims, out_dim)

    # Reference (plain JAX, f32).
    h = jnp.maximum(x @ params["w1"] + params["b1"], 0.0)
    h = jnp.maximum(h @ params["w2"] + params["b2"], 0.0)
    ref = h @ params["w3"] + params["b3"]

    fwd = jax.jit(network_forward, static_argnames=("tb",))

    # f32 operand path: exact-semantics check, single grid step (tb=304).
    p_f32 = prepare_params(params, jnp.float32)
    y = jax.block_until_ready(fwd(x, p_f32))
    assert y.shape == (B, out_dim)
    assert jnp.allclose(y, ref, atol=1e-5, rtol=1e-5)

    # Multi-block path (exercises batch blocking + masked partial last block).
    y_blk = jax.block_until_ready(fwd(x, p_f32, tb=128))
    assert y_blk.shape == (B, out_dim)
    assert jnp.allclose(y_blk, ref, atol=1e-5, rtol=1e-5)

    # bf16 operand path (native MXU route on v6e/v7x): f32 accumulation,
    # bf16 mantissa on operands -> loose tolerance.
    p_bf16 = prepare_params(params, jnp.bfloat16)
    y_bf16 = jax.block_until_ready(fwd(x, p_bf16))
    assert y_bf16.shape == (B, out_dim)
    assert jnp.allclose(y_bf16, ref, atol=1e-1, rtol=1e-1)

    print("KERNEL_OK")
</pallas_src>

<mosaic_0001>
module attributes {stable_mosaic.version = 11 : i64} {
  func.func @mlp_kernel(%arg0: i32, %arg1: memref<304x8xf32, #tpu.memory_space<vmem>>, %arg2: memref<8x32xf32, #tpu.memory_space<vmem>>, %arg3: memref<1x32xf32, #tpu.memory_space<vmem>>, %arg4: memref<32x32xf32, #tpu.memory_space<vmem>>, %arg5: memref<1x32xf32, #tpu.memory_space<vmem>>, %arg6: memref<32x4xf32, #tpu.memory_space<vmem>>, %arg7: memref<1x4xf32, #tpu.memory_space<vmem>>, %arg8: memref<304x4xf32, #tpu.memory_space<vmem>>) attributes {dimension_semantics = [#tpu.dimension_semantics<parallel>], iteration_bounds = array<i64: 1>, scalar_prefetch = 0 : i64, scratch_operands = 0 : i64, tpu.core_type = #tpu.core_type<tc>, window_params = [{transform_indices = @transform_0, window_bounds = array<i64: 304, 8>}, {pipeline_mode = #tpu.pipeline_mode<synchronous>, transform_indices = @transform_1, window_bounds = array<i64: 8, 32>}, {pipeline_mode = #tpu.pipeline_mode<synchronous>, transform_indices = @transform_2, window_bounds = array<i64: 1, 32>}, {pipeline_mode = #tpu.pipeline_mode<synchronous>, transform_indices = @transform_3, window_bounds = array<i64: 32, 32>}, {pipeline_mode = #tpu.pipeline_mode<synchronous>, transform_indices = @transform_4, window_bounds = array<i64: 1, 32>}, {pipeline_mode = #tpu.pipeline_mode<synchronous>, transform_indices = @transform_5, window_bounds = array<i64: 32, 4>}, {pipeline_mode = #tpu.pipeline_mode<synchronous>, transform_indices = @transform_6, window_bounds = array<i64: 1, 4>}, {transform_indices = @transform_7, window_bounds = array<i64: 304, 4>}]} {
    %c0 = arith.constant 0 : index
    %c0_0 = arith.constant 0 : index
    %0 = vector.load %arg1[%c0, %c0_0] : memref<304x8xf32, #tpu.memory_space<vmem>>, vector<304x8xf32>
    %c0_1 = arith.constant 0 : index
    %c0_2 = arith.constant 0 : index
    %1 = vector.load %arg2[%c0_1, %c0_2] : memref<8x32xf32, #tpu.memory_space<vmem>>, vector<8x32xf32>
    %cst = arith.constant dense<0.000000e+00> : vector<304x32xf32>
    %2 = tpu.matmul %0, %1, %cst {dimension_numbers = #tpu.dot_dimension_numbers<[1], [0], [0], [1], [0, 0, 1, 1], [], []>} : vector<304x8xf32>, vector<8x32xf32>, vector<304x32xf32> -> vector<304x32xf32>
    %c0_3 = arith.constant 0 : index
    %c0_4 = arith.constant 0 : index
    %3 = vector.load %arg3[%c0_3, %c0_4] : memref<1x32xf32, #tpu.memory_space<vmem>>, vector<1x32xf32>
    %4 = vector.broadcast %3 : vector<1x32xf32> to vector<304x32xf32>
    %5 = arith.addf %2, %4 : vector<304x32xf32>
    %cst_5 = arith.constant 0.000000e+00 : f32
    %6 = vector.broadcast %cst_5 : f32 to vector<304x32xf32>
    %7 = arith.maximumf %5, %6 : vector<304x32xf32>
    %c0_6 = arith.constant 0 : index
    %c0_7 = arith.constant 0 : index
    %8 = vector.load %arg4[%c0_6, %c0_7] : memref<32x32xf32, #tpu.memory_space<vmem>>, vector<32x32xf32>
    %cst_8 = arith.constant dense<0.000000e+00> : vector<304x32xf32>
    %9 = tpu.matmul %7, %8, %cst_8 {dimension_numbers = #tpu.dot_dimension_numbers<[1], [0], [0], [1], [0, 0, 1, 1], [], []>} : vector<304x32xf32>, vector<32x32xf32>, vector<304x32xf32> -> vector<304x32xf32>
    %c0_9 = arith.constant 0 : index
    %c0_10 = arith.constant 0 : index
    %10 = vector.load %arg5[%c0_9, %c0_10] : memref<1x32xf32, #tpu.memory_space<vmem>>, vector<1x32xf32>
    %11 = vector.broadcast %10 : vector<1x32xf32> to vector<304x32xf32>
    %12 = arith.addf %9, %11 : vector<304x32xf32>
    %cst_11 = arith.constant 0.000000e+00 : f32
    %13 = vector.broadcast %cst_11 : f32 to vector<304x32xf32>
    %14 = arith.maximumf %12, %13 : vector<304x32xf32>
    %c0_12 = arith.constant 0 : index
    %c0_13 = arith.constant 0 : index
    %15 = vector.load %arg6[%c0_12, %c0_13] : memref<32x4xf32, #tpu.memory_space<vmem>>, vector<32x4xf32>
    %cst_14 = arith.constant dense<0.000000e+00> : vector<304x4xf32>
    %16 = tpu.matmul %14, %15, %cst_14 {dimension_numbers = #tpu.dot_dimension_numbers<[1], [0], [0], [1], [0, 0, 1, 1], [], []>} : vector<304x32xf32>, vector<32x4xf32>, vector<304x4xf32> -> vector<304x4xf32>
    %c0_15 = arith.constant 0 : index
    %c0_16 = arith.constant 0 : index
    %17 = vector.load %arg7[%c0_15, %c0_16] : memref<1x4xf32, #tpu.memory_space<vmem>>, vector<1x4xf32>
    %18 = vector.broadcast %17 : vector<1x4xf32> to vector<304x4xf32>
    %19 = arith.addf %16, %18 : vector<304x4xf32>
    %c0_17 = arith.constant 0 : index
    %c0_18 = arith.constant 0 : index
    %20 = vector.load %arg8[%c0_17, %c0_18] : memref<304x4xf32, #tpu.memory_space<vmem>>, vector<304x4xf32>
    tpu.vector_store %arg8[%c0_17, %c0_18], %19 {strides = array<i32>} : memref<304x4xf32, #tpu.memory_space<vmem>>, vector<304x4xf32>,
    return
  }
  func.func @transform_0(%arg0: i32) -> (i32, i32) {
    %c0_i32 = arith.constant 0 : i32
    %c0_i32_0 = arith.constant 0 : i32
    return %arg0, %c0_i32 : i32, i32
  }
  func.func @transform_1(%arg0: i32) -> (i32, i32) {
    %c0_i32 = arith.constant 0 : i32
    %c0_i32_0 = arith.constant 0 : i32
    %c0_i32_1 = arith.constant 0 : i32
    return %c0_i32, %c0_i32_0 : i32, i32
  }
  func.func @transform_2(%arg0: i32) -> (i32, i32) {
    %c0_i32 = arith.constant 0 : i32
    %c0_i32_0 = arith.constant 0 : i32
    %c0_i32_1 = arith.constant 0 : i32
    return %c0_i32, %c0_i32_0 : i32, i32
  }
  func.func @transform_3(%arg0: i32) -> (i32, i32) {
    %c0_i32 = arith.constant 0 : i32
    %c0_i32_0 = arith.constant 0 : i32
    %c0_i32_1 = arith.constant 0 : i32
    return %c0_i32, %c0_i32_0 : i32, i32
  }
  func.func @transform_4(%arg0: i32) -> (i32, i32) {
    %c0_i32 = arith.constant 0 : i32
    %c0_i32_0 = arith.constant 0 : i32
    %c0_i32_1 = arith.constant 0 : i32
    return %c0_i32, %c0_i32_0 : i32, i32
  }
  func.func @transform_5(%arg0: i32) -> (i32, i32) {
    %c0_i32 = arith.constant 0 : i32
    %c0_i32_0 = arith.constant 0 : i32
    %c0_i32_1 = arith.constant 0 : i32
    return %c0_i32, %c0_i32_0 : i32, i32
  }
  func.func @transform_6(%arg0: i32) -> (i32, i32) {
    %c0_i32 = arith.constant 0 : i32
    %c0_i32_0 = arith.constant 0 : i32
    %c0_i32_1 = arith.constant 0 : i32
    return %c0_i32, %c0_i32_0 : i32, i32
  }
  func.func @transform_7(%arg0: i32) -> (i32, i32) {
    %c0_i32 = arith.constant 0 : i32
    %c0_i32_0 = arith.constant 0 : i32
    return %arg0, %c0_i32 : i32, i32
  }
}

</mosaic_0001>

<llo_original>
// kernel: network_forward.1
$region0: #{network_forward.1}
  #allocation0 [shape = 'u32[]', space=smem, size = 0x4, offset = 0x4, fixed_abs, tag = 'smem constant byte address 0x4 - core index']
  #allocation1 [shape = 'u32[144,128]{1,0:T(1,128)}', space=vmem, size = 0x12000, scoped, tag = 'internal scratch']
  %s0 = inlined_call_operand.vmem [shape: f32[300,8], index: 0, kind: input, shape index: {}]
  %s1 = inlined_call_operand.vmem [shape: f32[8,32], index: 1, kind: input, shape index: {}]
  %s2 = inlined_call_operand.vmem [shape: f32[1,32], index: 2, kind: input, shape index: {}]
  %s3 = inlined_call_operand.vmem [shape: f32[32,32], index: 3, kind: input, shape index: {}]
  %s4 = inlined_call_operand.vmem [shape: f32[1,32], index: 4, kind: input, shape index: {}]
  %s5 = inlined_call_operand.vmem [shape: f32[32,4], index: 5, kind: input, shape index: {}]
  %s6 = inlined_call_operand.vmem [shape: f32[1,4], index: 6, kind: input, shape index: {}]
  %s7 = inlined_call_operand.vmem [shape: f32[300,4], index: 7, kind: output, shape index: {}]
  %s8 = sld [smem:[#allocation0]]
  $region38: #{network_forward.1} parent=0
    _
  %s10 = ssub.s32 1, %s8
  %s11 = scalar_select 0, %s10, %s8
  // Predicated region
  $region2: #{network_forward.1} parent=0 // pred_check
    _
  $region3: #{network_forward.1} parent=0 // pred_check_branch
    %13 = sbr.rel (0) target = $region5
  $region4: #{network_forward.1} parent=0 // pred_region
    _
  $region5: #{network_forward.1} parent=0 // pred_fallthru
    _
  // Predicated region
  $region6: #{network_forward.1} parent=0 // pred_check
    _
  $region7: #{network_forward.1} parent=0 // pred_check_branch
    %15 = sbr.rel (0) target = $region9
  $region8: #{network_forward.1} parent=0 // pred_region
    _
  $region9: #{network_forward.1} parent=0 // pred_fallthru
    _
  // Predicated region
  $region10: #{network_forward.1} parent=0 // pred_check
    _
  $region11: #{network_forward.1} parent=0 // pred_check_branch
    %17 = sbr.rel (0) target = $region13
  $region12: #{network_forward.1} parent=0 // pred_region
    _
  $region13: #{network_forward.1} parent=0 // pred_fallthru
    _
  // Predicated region
  $region14: #{network_forward.1} parent=0 // pred_check
    _
  $region15: #{network_forward.1} parent=0 // pred_check_branch
    %19 = sbr.rel (0) target = $region17
  $region16: #{network_forward.1} parent=0 // pred_region
    _
  $region17: #{network_forward.1} parent=0 // pred_fallthru
    _
  // Predicated region
  $region18: #{network_forward.1} parent=0 // pred_check
    _
  $region19: #{network_forward.1} parent=0 // pred_check_branch
    %21 = sbr.rel (0) target = $region21
  $region20: #{network_forward.1} parent=0 // pred_region
    _
  $region21: #{network_forward.1} parent=0 // pred_fallthru
    _
  // Predicated region
  $region22: #{network_forward.1} parent=0 // pred_check
    _
  $region23: #{network_forward.1} parent=0 // pred_check_branch
    %23 = sbr.rel (0) target = $region25
  $region24: #{network_forward.1} parent=0 // pred_region
    _
  $region25: #{network_forward.1} parent=0 // pred_fallthru
    _
  // Predicated region
  $region26: #{network_forward.1} parent=0 // pred_check
    _
  $region27: #{network_forward.1} parent=0 // pred_check_branch
    %25 = sbr.rel (0) target = $region29
  $region28: #{network_forward.1} parent=0 // pred_region
    _
  $region29: #{network_forward.1} parent=0 // pred_fallthru
    _
  %v26 = vld [vmem:[%s0] sm:$0xff]
  %v27 = vld [vmem:[%s0 + $0x8] sm:$0xff]
  %v28 = vld [vmem:[%s0 + $0x10] sm:$0xff]
  %v29 = vld [vmem:[%s0 + $0x18] sm:$0xff]
  %v30 = vld [vmem:[%s0 + $0x20] sm:$0xff]
  %v31 = vld [vmem:[%s0 + $0x28] sm:$0xff]
  %v32 = vld [vmem:[%s0 + $0x30] sm:$0xff]
  %v33 = vld [vmem:[%s0 + $0x38] sm:$0xff]
  %v34 = vld [vmem:[%s0 + $0x40] sm:$0xff]
  %v35 = vld [vmem:[%s0 + $0x48] sm:$0xff]
  %v36 = vld [vmem:[%s0 + $0x50] sm:$0xff]
  %v37 = vld [vmem:[%s0 + $0x58] sm:$0xff]
  %v38 = vld [vmem:[%s0 + $0x60] sm:$0xff]
  %v39 = vld [vmem:[%s0 + $0x68] sm:$0xff]
  %v40 = vld [vmem:[%s0 + $0x70] sm:$0xff]
  %v41 = vld [vmem:[%s0 + $0x78] sm:$0xff]
  %v42 = vld [vmem:[%s0 + $0x80] sm:$0xff]
  %v43 = vld [vmem:[%s0 + $0x88] sm:$0xff]
  %v44 = vld [vmem:[%s0 + $0x90] sm:$0xff]
  %v45 = vld [vmem:[%s0 + $0x98] sm:$0xff]
  %v46 = vld [vmem:[%s0 + $0xa0] sm:$0xff]
  %v47 = vld [vmem:[%s0 + $0xa8] sm:$0xff]
  %v48 = vld [vmem:[%s0 + $0xb0] sm:$0xff]
  %v49 = vld [vmem:[%s0 + $0xb8] sm:$0xff]
  %v50 = vld [vmem:[%s0 + $0xc0] sm:$0xff]
  %v51 = vld [vmem:[%s0 + $0xc8] sm:$0xff]
  %v52 = vld [vmem:[%s0 + $0xd0] sm:$0xff]
  %v53 = vld [vmem:[%s0 + $0xd8] sm:$0xff]
  %v54 = vld [vmem:[%s0 + $0xe0] sm:$0xff]
  %v55 = vld [vmem:[%s0 + $0xe8] sm:$0xff]
  %v56 = vld [vmem:[%s0 + $0xf0] sm:$0xff]
  %v57 = vld [vmem:[%s0 + $0xf8] sm:$0xff]
  %v58 = vld [vmem:[%s0 + $0x100] sm:$0xff]
  %v59 = vld [vmem:[%s0 + $0x108] sm:$0xff]
  %v60 = vld [vmem:[%s0 + $0x110] sm:$0xff]
  %v61 = vld [vmem:[%s0 + $0x118] sm:$0xff]
  %v62 = vld [vmem:[%s0 + $0x120] sm:$0xff]
  %v63 = vld [vmem:[%s0 + $0x128] sm:$0xff]
  %v64 = vld [vmem:[%s1] sm:$0xff]
  %v65 = vld [vmem:[%s2] sm:$0x1]
  %v67 = vlaneseq
  %v68 = vshrl.u32 %v67, 7
  %v69 = vsub.s32 0, %v68
  %v70 = vrot.slane %v65, %v69
  %vm72 = vcmask 64512
  %v74 = vsel %vm72, %v26, 0
  %v77 = vsel %vm72, %v27, 0
  %v80 = vsel %vm72, %v28, 0
  %v83 = vsel %vm72, %v29, 0
  %v86 = vsel %vm72, %v30, 0
  %v89 = vsel %vm72, %v31, 0
  %v92 = vsel %vm72, %v32, 0
  %v95 = vsel %vm72, %v33, 0
  %v98 = vsel %vm72, %v34, 0
  %v101 = vsel %vm72, %v35, 0
  %v104 = vsel %vm72, %v36, 0
  %v107 = vsel %vm72, %v37, 0
  %v110 = vsel %vm72, %v38, 0
  %v113 = vsel %vm72, %v39, 0
  %v116 = vsel %vm72, %v40, 0
  %v119 = vsel %vm72, %v41, 0
  %v122 = vsel %vm72, %v42, 0
  %v125 = vsel %vm72, %v43, 0
  %v128 = vsel %vm72, %v44, 0
  %v131 = vsel %vm72, %v45, 0
  %v134 = vsel %vm72, %v46, 0
  %v137 = vsel %vm72, %v47, 0
  %v140 = vsel %vm72, %v48, 0
  %v143 = vsel %vm72, %v49, 0
  %v146 = vsel %vm72, %v50, 0
  %v149 = vsel %vm72, %v51, 0
  %v152 = vsel %vm72, %v52, 0
  %v155 = vsel %vm72, %v53, 0
  %v158 = vsel %vm72, %v54, 0
  %v161 = vsel %vm72, %v55, 0
  %v164 = vsel %vm72, %v56, 0
  %v167 = vsel %vm72, %v57, 0
  %v170 = vsel %vm72, %v58, 0
  %v173 = vsel %vm72, %v59, 0
  %v176 = vsel %vm72, %v60, 0
  %v179 = vsel %vm72, %v61, 0
  %v182 = vsel %vm72, %v62, 0
  %v185 = vsel %vm72, %v63, 0
  %187 = vmatprep.subr.mxu0 0.0
  %188 = vmatpush1.msra.mxu0 0.0
  %189 = vmatprep.subr.mxu0 0.0
  %190 = vmatpush1.msra.mxu0 0.0
  %191 = vmatprep.subr.mxu0 0.0
  %192 = vmatpush1.msra.mxu0 0.0
  %193 = vmatprep.subr.mxu0 0.0
  %194 = vmatpush1.msra.mxu0 0.0
  %195 = vmatprep.subr.mxu0 0.0
  %196 = vmatpush1.msra.mxu0 0.0
  %197 = vmatprep.subr.mxu0 0.0
  %198 = vmatpush1.msra.mxu0 0.0
  %199 = vmatprep.subr.mxu0 0.0
  %200 = vmatpush1.msra.mxu0 0.0
  %201 = vmatprep.subr.mxu0 0.0
  %202 = vmatpush1.msra.mxu0 0.0
  %203 = vmatprep.subr.mxu0 0.0
  %204 = vmatpush1.msra.mxu0 0.0
  %205 = vmatprep.subr.mxu0 0.0
  %206 = vmatpush1.msra.mxu0 0.0
  %207 = vmatprep.subr.mxu0 0.0
  %208 = vmatpush1.msra.mxu0 0.0
  %209 = vmatprep.subr.mxu0 0.0
  %210 = vmatpush1.msra.mxu0 0.0
  %211 = vmatprep.subr.mxu0 0.0
  %212 = vmatpush1.msra.mxu0 0.0
  %213 = vmatprep.subr.mxu0 0.0
  %214 = vmatpush1.msra.mxu0 0.0
  %215 = vmatprep.subr.mxu0 0.0
  %216 = vmatpush1.msra.mxu0 0.0
  %217 = vmatprep.subr.mxu0 0.0
  %218 = vmatpush1.msra.mxu0 %v64
  %219 = vmatprep.subr.mxu0 0.0
  %220 = vmatpush2.msra.mxu0 0.0
  %221 = vmatprep.subr.mxu0 0.0
  %222 = vmatpush2.msra.mxu0 0.0
  %223 = vmatprep.subr.mxu0 0.0
  %224 = vmatpush2.msra.mxu0 0.0
  %225 = vmatprep.subr.mxu0 0.0
  %226 = vmatpush2.msra.mxu0 0.0
  %227 = vmatprep.subr.mxu0 0.0
  %228 = vmatpush2.msra.mxu0 0.0
  %229 = vmatprep.subr.mxu0 0.0
  %230 = vmatpush2.msra.mxu0 0.0
  %231 = vmatprep.subr.mxu0 0.0
  %232 = vmatpush2.msra.mxu0 0.0
  %233 = vmatprep.subr.mxu0 0.0
  %234 = vmatpush2.msra.mxu0 0.0
  %235 = vmatprep.subr.mxu0 0.0
  %236 = vmatpush2.msra.mxu0 0.0
  %237 = vmatprep.subr.mxu0 0.0
  %238 = vmatpush2.msra.mxu0 0.0
  %239 = vmatprep.subr.mxu0 0.0
  %240 = vmatpush2.msra.mxu0 0.0
  %241 = vmatprep.subr.mxu0 0.0
  %242 = vmatpush2.msra.mxu0 0.0
  %243 = vmatprep.subr.mxu0 0.0
  %244 = vmatpush2.msra.mxu0 0.0
  %245 = vmatprep.subr.mxu0 0.0
  %246 = vmatpush2.msra.mxu0 0.0
  %247 = vmatprep.subr.mxu0 0.0
  %248 = vmatpush2.msra.mxu0 0.0
  %249 = vmatprep.subr.mxu0 0.0
  %250 = vmatpush2.msra.mxu0 0.0
  %251 = vmatprep.mubr.f32.mxu0 0.0
  %252 = vmatmul.mubr.f32.gmra.mxu0 %v74
  %v253 = vpop.f32.mrf.mxu0
  %v254 = vadd.f32 %v70, %v253
  %v255 = vpop.f32.mrf.mxu0
  %256 = vmatprep.mubr.f32.mxu0 0.0
  %257 = vmatmul.mubr.f32.gmra.mxu0 %v77
  %v258 = vpop.f32.mrf.mxu0
  %v259 = vadd.f32 %v70, %v258
  %v260 = vpop.f32.mrf.mxu0
  %261 = vmatprep.mubr.f32.mxu0 0.0
  %262 = vmatmul.mubr.f32.gmra.mxu0 %v80
  %v263 = vpop.f32.mrf.mxu0
  %v264 = vadd.f32 %v70, %v263
  %v265 = vpop.f32.mrf.mxu0
  %266 = vmatprep.mubr.f32.mxu0 0.0
  %267 = vmatmul.mubr.f32.gmra.mxu0 %v83
  %v268 = vpop.f32.mrf.mxu0
  %v269 = vadd.f32 %v70, %v268
  %v270 = vpop.f32.mrf.mxu0
  %271 = vmatprep.mubr.f32.mxu0 0.0
  %272 = vmatmul.mubr.f32.gmra.mxu0 %v86
  %v273 = vpop.f32.mrf.mxu0
  %v274 = vadd.f32 %v70, %v273
  %v275 = vpop.f32.mrf.mxu0
  %276 = vmatprep.mubr.f32.mxu0 0.0
  %277 = vmatmul.mubr.f32.gmra.mxu0 %v89
  %v278 = vpop.f32.mrf.mxu0
  %v279 = vadd.f32 %v70, %v278
  %v280 = vpop.f32.mrf.mxu0
  %281 = vmatprep.mubr.f32.mxu0 0.0
  %282 = vmatmul.mubr.f32.gmra.mxu0 %v92
  %v283 = vpop.f32.mrf.mxu0
  %v284 = vadd.f32 %v70, %v283
  %v285 = vpop.f32.mrf.mxu0
  %286 = vmatprep.mubr.f32.mxu0 0.0
  %287 = vmatmul.mubr.f32.gmra.mxu0 %v95
  %v288 = vpop.f32.mrf.mxu0
  %v289 = vadd.f32 %v70, %v288
  %v290 = vpop.f32.mrf.mxu0
  %291 = vmatprep.mubr.f32.mxu0 0.0
  %292 = vmatmul.mubr.f32.gmra.mxu0 %v98
  %v293 = vpop.f32.mrf.mxu0
  %v294 = vadd.f32 %v70, %v293
  %v295 = vpop.f32.mrf.mxu0
  %296 = vmatprep.mubr.f32.mxu0 0.0
  %297 = vmatmul.mubr.f32.gmra.mxu0 %v101
  %v298 = vpop.f32.mrf.mxu0
  %v299 = vadd.f32 %v70, %v298
  %v300 = vpop.f32.mrf.mxu0
  %301 = vmatprep.mubr.f32.mxu0 0.0
  %302 = vmatmul.mubr.f32.gmra.mxu0 %v104
  %v303 = vpop.f32.mrf.mxu0
  %v304 = vadd.f32 %v70, %v303
  %v305 = vpop.f32.mrf.mxu0
  %306 = vmatprep.mubr.f32.mxu0 0.0
  %307 = vmatmul.mubr.f32.gmra.mxu0 %v107
  %v308 = vpop.f32.mrf.mxu0
  %v309 = vadd.f32 %v70, %v308
  %v310 = vpop.f32.mrf.mxu0
  %311 = vmatprep.mubr.f32.mxu0 0.0
  %312 = vmatmul.mubr.f32.gmra.mxu0 %v110
  %v313 = vpop.f32.mrf.mxu0
  %v314 = vadd.f32 %v70, %v313
  %v315 = vpop.f32.mrf.mxu0
  %316 = vmatprep.mubr.f32.mxu0 0.0
  %317 = vmatmul.mubr.f32.gmra.mxu0 %v113
  %v318 = vpop.f32.mrf.mxu0
  %v319 = vadd.f32 %v70, %v318
  %v320 = vpop.f32.mrf.mxu0
  %321 = vmatprep.mubr.f32.mxu0 0.0
  %322 = vmatmul.mubr.f32.gmra.mxu0 %v116
  %v323 = vpop.f32.mrf.mxu0
  %v324 = vadd.f32 %v70, %v323
  %v325 = vpop.f32.mrf.mxu0
  %326 = vmatprep.mubr.f32.mxu0 0.0
  %327 = vmatmul.mubr.f32.gmra.mxu0 %v119
  %v328 = vpop.f32.mrf.mxu0
  %v329 = vadd.f32 %v70, %v328
  %v330 = vpop.f32.mrf.mxu0
  %331 = vmatprep.mubr.f32.mxu0 0.0
  %332 = vmatmul.mubr.f32.gmra.mxu0 %v122
  %v333 = vpop.f32.mrf.mxu0
  %v334 = vadd.f32 %v70, %v333
  %v335 = vpop.f32.mrf.mxu0
  %336 = vmatprep.mubr.f32.mxu0 0.0
  %337 = vmatmul.mubr.f32.gmra.mxu0 %v125
  %v338 = vpop.f32.mrf.mxu0
  %v339 = vadd.f32 %v70, %v338
  %v340 = vpop.f32.mrf.mxu0
  %341 = vmatprep.mubr.f32.mxu0 0.0
  %342 = vmatmul.mubr.f32.gmra.mxu0 %v128
  %v343 = vpop.f32.mrf.mxu0
  %v344 = vadd.f32 %v70, %v343
  %v345 = vpop.f32.mrf.mxu0
  %346 = vmatprep.mubr.f32.mxu0 0.0
  %347 = vmatmul.mubr.f32.gmra.mxu0 %v131
  %v348 = vpop.f32.mrf.mxu0
  %v349 = vadd.f32 %v70, %v348
  %v350 = vpop.f32.mrf.mxu0
  %351 = vmatprep.mubr.f32.mxu0 0.0
  %352 = vmatmul.mubr.f32.gmra.mxu0 %v134
  %v353 = vpop.f32.mrf.mxu0
  %v354 = vadd.f32 %v70, %v353
  %v355 = vpop.f32.mrf.mxu0
  %356 = vmatprep.mubr.f32.mxu0 0.0
  %357 = vmatmul.mubr.f32.gmra.mxu0 %v137
  %v358 = vpop.f32.mrf.mxu0
  %v359 = vadd.f32 %v70, %v358
  %v360 = vpop.f32.mrf.mxu0
  %361 = vmatprep.mubr.f32.mxu0 0.0
  %362 = vmatmul.mubr.f32.gmra.mxu0 %v140
  %v363 = vpop.f32.mrf.mxu0
  %v364 = vadd.f32 %v70, %v363
  %v365 = vpop.f32.mrf.mxu0
  %366 = vmatprep.mubr.f32.mxu0 0.0
  %367 = vmatmul.mubr.f32.gmra.mxu0 %v143
  %v368 = vpop.f32.mrf.mxu0
  %v369 = vadd.f32 %v70, %v368
  %v370 = vpop.f32.mrf.mxu0
  %371 = vmatprep.mubr.f32.mxu0 0.0
  %372 = vmatmul.mubr.f32.gmra.mxu0 %v146
  %v373 = vpop.f32.mrf.mxu0
  %v374 = vadd.f32 %v70, %v373
  %v375 = vpop.f32.mrf.mxu0
  %376 = vmatprep.mubr.f32.mxu0 0.0
  %377 = vmatmul.mubr.f32.gmra.mxu0 %v149
  %v378 = vpop.f32.mrf.mxu0
  %v379 = vadd.f32 %v70, %v378
  %v380 = vpop.f32.mrf.mxu0
  %381 = vmatprep.mubr.f32.mxu0 0.0
  %382 = vmatmul.mubr.f32.gmra.mxu0 %v152
  %v383 = vpop.f32.mrf.mxu0
  %v384 = vadd.f32 %v70, %v383
  %v385 = vpop.f32.mrf.mxu0
  %386 = vmatprep.mubr.f32.mxu0 0.0
  %387 = vmatmul.mubr.f32.gmra.mxu0 %v155
  %v388 = vpop.f32.mrf.mxu0
  %v389 = vadd.f32 %v70, %v388
  %v390 = vpop.f32.mrf.mxu0
  %391 = vmatprep.mubr.f32.mxu0 0.0
  %392 = vmatmul.mubr.f32.gmra.mxu0 %v158
  %v393 = vpop.f32.mrf.mxu0
  %v394 = vadd.f32 %v70, %v393
  %v395 = vpop.f32.mrf.mxu0
  %396 = vmatprep.mubr.f32.mxu0 0.0
  %397 = vmatmul.mubr.f32.gmra.mxu0 %v161
  %v398 = vpop.f32.mrf.mxu0
  %v399 = vadd.f32 %v70, %v398
  %v400 = vpop.f32.mrf.mxu0
  %401 = vmatprep.mubr.f32.mxu0 0.0
  %402 = vmatmul.mubr.f32.gmra.mxu0 %v164
  %v403 = vpop.f32.mrf.mxu0
  %v404 = vadd.f32 %v70, %v403
  %v405 = vpop.f32.mrf.mxu0
  %406 = vmatprep.mubr.f32.mxu0 0.0
  %407 = vmatmul.mubr.f32.gmra.mxu0 %v167
  %v408 = vpop.f32.mrf.mxu0
  %v409 = vadd.f32 %v70, %v408
  %v410 = vpop.f32.mrf.mxu0
  %411 = vmatprep.mubr.f32.mxu0 0.0
  %412 = vmatmul.mubr.f32.gmra.mxu0 %v170
  %v413 = vpop.f32.mrf.mxu0
  %v414 = vadd.f32 %v70, %v413
  %v415 = vpop.f32.mrf.mxu0
  %416 = vmatprep.mubr.f32.mxu0 0.0
  %417 = vmatmul.mubr.f32.gmra.mxu0 %v173
  %v418 = vpop.f32.mrf.mxu0
  %v419 = vadd.f32 %v70, %v418
  %v420 = vpop.f32.mrf.mxu0
  %421 = vmatprep.mubr.f32.mxu0 0.0
  %422 = vmatmul.mubr.f32.gmra.mxu0 %v176
  %v423 = vpop.f32.mrf.mxu0
  %v424 = vadd.f32 %v70, %v423
  %v425 = vpop.f32.mrf.mxu0
  %426 = vmatprep.mubr.f32.mxu0 0.0
  %427 = vmatmul.mubr.f32.gmra.mxu0 %v179
  %v428 = vpop.f32.mrf.mxu0
  %v429 = vadd.f32 %v70, %v428
  %v430 = vpop.f32.mrf.mxu0
  %431 = vmatprep.mubr.f32.mxu0 0.0
  %432 = vmatmul.mubr.f32.gmra.mxu0 %v182
  %v433 = vpop.f32.mrf.mxu0
  %v434 = vadd.f32 %v70, %v433
  %v435 = vpop.f32.mrf.mxu0
  %436 = vmatprep.mubr.f32.mxu0 0.0
  %437 = vmatmul.mubr.f32.gmra.mxu0 %v185
  %v438 = vpop.f32.mrf.mxu0
  %v439 = vadd.f32 %v70, %v438
  %v440 = vpop.f32.mrf.mxu0
  %441 = vdwg.mxu0
  %v442 = vmax.f32 %v254, 0.0
  %v443 = vmax.f32 %v259, 0.0
  %v444 = vmax.f32 %v264, 0.0
  %v445 = vmax.f32 %v269, 0.0
  %v446 = vmax.f32 %v274, 0.0
  %v447 = vmax.f32 %v279, 0.0
  %v448 = vmax.f32 %v284, 0.0
  %v449 = vmax.f32 %v289, 0.0
  %v450 = vmax.f32 %v294, 0.0
  %v451 = vmax.f32 %v299, 0.0
  %v452 = vmax.f32 %v304, 0.0
  %v453 = vmax.f32 %v309, 0.0
  %v454 = vmax.f32 %v314, 0.0
  %v455 = vmax.f32 %v319, 0.0
  %v456 = vmax.f32 %v324, 0.0
  %v457 = vmax.f32 %v329, 0.0
  %v458 = vmax.f32 %v334, 0.0
  %v459 = vmax.f32 %v339, 0.0
  %v460 = vmax.f32 %v344, 0.0
  %v461 = vmax.f32 %v349, 0.0
  %v462 = vmax.f32 %v354, 0.0
  %v463 = vmax.f32 %v359, 0.0
  %v464 = vmax.f32 %v364, 0.0
  %v465 = vmax.f32 %v369, 0.0
  %v466 = vmax.f32 %v374, 0.0
  %v467 = vmax.f32 %v379, 0.0
  %v468 = vmax.f32 %v384, 0.0
  %v469 = vmax.f32 %v389, 0.0
  %v470 = vmax.f32 %v394, 0.0
  %v471 = vmax.f32 %v399, 0.0
  %v472 = vmax.f32 %v404, 0.0
  %v473 = vmax.f32 %v409, 0.0
  %v474 = vmax.f32 %v414, 0.0
  %v475 = vmax.f32 %v419, 0.0
  %v476 = vmax.f32 %v424, 0.0
  %v477 = vmax.f32 %v429, 0.0
  %v478 = vmax.f32 %v434, 0.0
  %v479 = vmax.f32 %v439, 0.0
  %v480 = vld [vmem:[%s3] sm:$0xff]
  %v481 = vld [vmem:[%s3 + $0x8] sm:$0xff]
  %v482 = vld [vmem:[%s3 + $0x10] sm:$0xff]
  %v483 = vld [vmem:[%s3 + $0x18] sm:$0xff]
  %v484 = vld [vmem:[%s4] sm:$0x1]
  %v486 = vlaneseq
  %v487 = vshrl.u32 %v486, 7
  %v488 = vsub.s32 0, %v487
  %v489 = vrot.slane %v484, %v488
  %vm491 = vcmask 261120
  %v493 = vsel %vm491, %v442, 0
  %v496 = vsel %vm491, %v443, 0
  %v499 = vsel %vm491, %v444, 0
  %v502 = vsel %vm491, %v445, 0
  %v505 = vsel %vm491, %v446, 0
  %v508 = vsel %vm491, %v447, 0
  %v511 = vsel %vm491, %v448, 0
  %v514 = vsel %vm491, %v449, 0
  %v517 = vsel %vm491, %v450, 0
  %v520 = vsel %vm491, %v451, 0
  %v523 = vsel %vm491, %v452, 0
  %v526 = vsel %vm491, %v453, 0
  %v529 = vsel %vm491, %v454, 0
  %v532 = vsel %vm491, %v455, 0
  %v535 = vsel %vm491, %v456, 0
  %v538 = vsel %vm491, %v457, 0
  %v541 = vsel %vm491, %v458, 0
  %v544 = vsel %vm491, %v459, 0
  %v547 = vsel %vm491, %v460, 0
  %v550 = vsel %vm491, %v461, 0
  %v553 = vsel %vm491, %v462, 0
  %v556 = vsel %vm491, %v463, 0
  %v559 = vsel %vm491, %v464, 0
  %v562 = vsel %vm491, %v465, 0
  %v565 = vsel %vm491, %v466, 0
  %v568 = vsel %vm491, %v467, 0
  %v571 = vsel %vm491, %v468, 0
  %v574 = vsel %vm491, %v469, 0
  %v577 = vsel %vm491, %v470, 0
  %v580 = vsel %vm491, %v471, 0
  %v583 = vsel %vm491, %v472, 0
  %v586 = vsel %vm491, %v473, 0
  %v589 = vsel %vm491, %v474, 0
  %v592 = vsel %vm491, %v475, 0
  %v595 = vsel %vm491, %v476, 0
  %v598 = vsel %vm491, %v477, 0
  %v601 = vsel %vm491, %v478, 0
  %v604 = vsel %vm491, %v479, 0
  %606 = vmatprep.subr.mxu0 0.0
  %607 = vmatpush1.msra.mxu0 0.0
  %608 = vmatprep.subr.mxu0 0.0
  %609 = vmatpush1.msra.mxu0 0.0
  %610 = vmatprep.subr.mxu0 0.0
  %611 = vmatpush1.msra.mxu0 0.0
  %612 = vmatprep.subr.mxu0 0.0
  %613 = vmatpush1.msra.mxu0 0.0
  %614 = vmatprep.subr.mxu0 0.0
  %615 = vmatpush1.msra.mxu0 0.0
  %616 = vmatprep.subr.mxu0 0.0
  %617 = vmatpush1.msra.mxu0 0.0
  %618 = vmatprep.subr.mxu0 0.0
  %619 = vmatpush1.msra.mxu0 0.0
  %620 = vmatprep.subr.mxu0 0.0
  %621 = vmatpush1.msra.mxu0 0.0
  %622 = vmatprep.subr.mxu0 0.0
  %623 = vmatpush1.msra.mxu0 0.0
  %624 = vmatprep.subr.mxu0 0.0
  %625 = vmatpush1.msra.mxu0 0.0
  %626 = vmatprep.subr.mxu0 0.0
  %627 = vmatpush1.msra.mxu0 0.0
  %628 = vmatprep.subr.mxu0 0.0
  %629 = vmatpush1.msra.mxu0 0.0
  %630 = vmatprep.subr.mxu0 0.0
  %631 = vmatpush1.msra.mxu0 %v483
  %632 = vmatprep.subr.mxu0 0.0
  %633 = vmatpush1.msra.mxu0 %v482
  %634 = vmatprep.subr.mxu0 0.0
  %635 = vmatpush1.msra.mxu0 %v481
  %636 = vmatprep.subr.mxu0 0.0
  %637 = vmatpush1.msra.mxu0 %v480
  %638 = vmatprep.subr.mxu0 0.0
  %639 = vmatpush2.msra.mxu0 0.0
  %640 = vmatprep.subr.mxu0 0.0
  %641 = vmatpush2.msra.mxu0 0.0
  %642 = vmatprep.subr.mxu0 0.0
  %643 = vmatpush2.msra.mxu0 0.0
  %644 = vmatprep.subr.mxu0 0.0
  %645 = vmatpush2.msra.mxu0 0.0
  %646 = vmatprep.subr.mxu0 0.0
  %647 = vmatpush2.msra.mxu0 0.0
  %648 = vmatprep.subr.mxu0 0.0
  %649 = vmatpush2.msra.mxu0 0.0
  %650 = vmatprep.subr.mxu0 0.0
  %651 = vmatpush2.msra.mxu0 0.0
  %652 = vmatprep.subr.mxu0 0.0
  %653 = vmatpush2.msra.mxu0 0.0
  %654 = vmatprep.subr.mxu0 0.0
  %655 = vmatpush2.msra.mxu0 0.0
  %656 = vmatprep.subr.mxu0 0.0
  %657 = vmatpush2.msra.mxu0 0.0
  %658 = vmatprep.subr.mxu0 0.0
  %659 = vmatpush2.msra.mxu0 0.0
  %660 = vmatprep.subr.mxu0 0.0
  %661 = vmatpush2.msra.mxu0 0.0
  %662 = vmatprep.subr.mxu0 0.0
  %663 = vmatpush2.msra.mxu0 0.0
  %664 = vmatprep.subr.mxu0 0.0
  %665 = vmatpush2.msra.mxu0 0.0
  %666 = vmatprep.subr.mxu0 0.0
  %667 = vmatpush2.msra.mxu0 0.0
  %668 = vmatprep.subr.mxu0 0.0
  %669 = vmatpush2.msra.mxu0 0.0
  %670 = vmatprep.mubr.f32.mxu0 0.0
  %671 = vmatmul.mubr.f32.gmra.mxu0 %v493
  %v672 = vpop.f32.mrf.mxu0
  %v673 = vadd.f32 %v489, %v672
  %v674 = vpop.f32.mrf.mxu0
  %675 = vmatprep.mubr.f32.mxu0 0.0
  %676 = vmatmul.mubr.f32.gmra.mxu0 %v496
  %v677 = vpop.f32.mrf.mxu0
  %v678 = vadd.f32 %v489, %v677
  %v679 = vpop.f32.mrf.mxu0
  %680 = vmatprep.mubr.f32.mxu0 0.0
  %681 = vmatmul.mubr.f32.gmra.mxu0 %v499
  %v682 = vpop.f32.mrf.mxu0
  %v683 = vadd.f32 %v489, %v682
  %v684 = vpop.f32.mrf.mxu0
  %685 = vmatprep.mubr.f32.mxu0 0.0
  %686 = vmatmul.mubr.f32.gmra.mxu0 %v502
  %v687 = vpop.f32.mrf.mxu0
  %v688 = vadd.f32 %v489, %v687
  %v689 = vpop.f32.mrf.mxu0
  %690 = vmatprep.mubr.f32.mxu0 0.0
  %691 = vmatmul.mubr.f32.gmra.mxu0 %v505
  %v692 = vpop.f32.mrf.mxu0
  %v693 = vadd.f32 %v489, %v692
  %v694 = vpop.f32.mrf.mxu0
  %695 = vmatprep.mubr.f32.mxu0 0.0
  %696 = vmatmul.mubr.f32.gmra.mxu0 %v508
  %v697 = vpop.f32.mrf.mxu0
  %v698 = vadd.f32 %v489, %v697
  %v699 = vpop.f32.mrf.mxu0
  %700 = vmatprep.mubr.f32.mxu0 0.0
  %701 = vmatmul.mubr.f32.gmra.mxu0 %v511
  %v702 = vpop.f32.mrf.mxu0
  %v703 = vadd.f32 %v489, %v702
  %v704 = vpop.f32.mrf.mxu0
  %705 = vmatprep.mubr.f32.mxu0 0.0
  %706 = vmatmul.mubr.f32.gmra.mxu0 %v514
  %v707 = vpop.f32.mrf.mxu0
  %v708 = vadd.f32 %v489, %v707
  %v709 = vpop.f32.mrf.mxu0
  %710 = vmatprep.mubr.f32.mxu0 0.0
  %711 = vmatmul.mubr.f32.gmra.mxu0 %v517
  %v712 = vpop.f32.mrf.mxu0
  %v713 = vadd.f32 %v489, %v712
  %v714 = vpop.f32.mrf.mxu0
  %715 = vmatprep.mubr.f32.mxu0 0.0
  %716 = vmatmul.mubr.f32.gmra.mxu0 %v520
  %v717 = vpop.f32.mrf.mxu0
  %v718 = vadd.f32 %v489, %v717
  %v719 = vpop.f32.mrf.mxu0
  %720 = vmatprep.mubr.f32.mxu0 0.0
  %721 = vmatmul.mubr.f32.gmra.mxu0 %v523
  %v722 = vpop.f32.mrf.mxu0
  %v723 = vadd.f32 %v489, %v722
  %v724 = vpop.f32.mrf.mxu0
  %725 = vmatprep.mubr.f32.mxu0 0.0
  %726 = vmatmul.mubr.f32.gmra.mxu0 %v526
  %v727 = vpop.f32.mrf.mxu0
  %v728 = vadd.f32 %v489, %v727
  %v729 = vpop.f32.mrf.mxu0
  %730 = vmatprep.mubr.f32.mxu0 0.0
  %731 = vmatmul.mubr.f32.gmra.mxu0 %v529
  %v732 = vpop.f32.mrf.mxu0
  %v733 = vadd.f32 %v489, %v732
  %v734 = vpop.f32.mrf.mxu0
  %735 = vmatprep.mubr.f32.mxu0 0.0
  %736 = vmatmul.mubr.f32.gmra.mxu0 %v532
  %v737 = vpop.f32.mrf.mxu0
  %v738 = vadd.f32 %v489, %v737
  %v739 = vpop.f32.mrf.mxu0
  %740 = vmatprep.mubr.f32.mxu0 0.0
  %741 = vmatmul.mubr.f32.gmra.mxu0 %v535
  %v742 = vpop.f32.mrf.mxu0
  %v743 = vadd.f32 %v489, %v742
  %v744 = vpop.f32.mrf.mxu0
  %745 = vmatprep.mubr.f32.mxu0 0.0
  %746 = vmatmul.mubr.f32.gmra.mxu0 %v538
  %v747 = vpop.f32.mrf.mxu0
  %v748 = vadd.f32 %v489, %v747
  %v749 = vpop.f32.mrf.mxu0
  %750 = vmatprep.mubr.f32.mxu0 0.0
  %751 = vmatmul.mubr.f32.gmra.mxu0 %v541
  %v752 = vpop.f32.mrf.mxu0
  %v753 = vadd.f32 %v489, %v752
  %v754 = vpop.f32.mrf.mxu0
  %755 = vmatprep.mubr.f32.mxu0 0.0
  %756 = vmatmul.mubr.f32.gmra.mxu0 %v544
  %v757 = vpop.f32.mrf.mxu0
  %v758 = vadd.f32 %v489, %v757
  %v759 = vpop.f32.mrf.mxu0
  %760 = vmatprep.mubr.f32.mxu0 0.0
  %761 = vmatmul.mubr.f32.gmra.mxu0 %v547
  %v762 = vpop.f32.mrf.mxu0
  %v763 = vadd.f32 %v489, %v762
  %v764 = vpop.f32.mrf.mxu0
  %765 = vmatprep.mubr.f32.mxu0 0.0
  %766 = vmatmul.mubr.f32.gmra.mxu0 %v550
  %v767 = vpop.f32.mrf.mxu0
  %v768 = vadd.f32 %v489, %v767
  %v769 = vpop.f32.mrf.mxu0
  %770 = vmatprep.mubr.f32.mxu0 0.0
  %771 = vmatmul.mubr.f32.gmra.mxu0 %v553
  %v772 = vpop.f32.mrf.mxu0
  %v773 = vadd.f32 %v489, %v772
  %v774 = vpop.f32.mrf.mxu0
  %775 = vmatprep.mubr.f32.mxu0 0.0
  %776 = vmatmul.mubr.f32.gmra.mxu0 %v556
  %v777 = vpop.f32.mrf.mxu0
  %v778 = vadd.f32 %v489, %v777
  %v779 = vpop.f32.mrf.mxu0
  %780 = vmatprep.mubr.f32.mxu0 0.0
  %781 = vmatmul.mubr.f32.gmra.mxu0 %v559
  %v782 = vpop.f32.mrf.mxu0
  %v783 = vadd.f32 %v489, %v782
  %v784 = vpop.f32.mrf.mxu0
  %785 = vmatprep.mubr.f32.mxu0 0.0
  %786 = vmatmul.mubr.f32.gmra.mxu0 %v562
  %v787 = vpop.f32.mrf.mxu0
  %v788 = vadd.f32 %v489, %v787
  %v789 = vpop.f32.mrf.mxu0
  %790 = vmatprep.mubr.f32.mxu0 0.0
  %791 = vmatmul.mubr.f32.gmra.mxu0 %v565
  %v792 = vpop.f32.mrf.mxu0
  %v793 = vadd.f32 %v489, %v792
  %v794 = vpop.f32.mrf.mxu0
  %795 = vmatprep.mubr.f32.mxu0 0.0
  %796 = vmatmul.mubr.f32.gmra.mxu0 %v568
  %v797 = vpop.f32.mrf.mxu0
  %v798 = vadd.f32 %v489, %v797
  %v799 = vpop.f32.mrf.mxu0
  %800 = vmatprep.mubr.f32.mxu0 0.0
  %801 = vmatmul.mubr.f32.gmra.mxu0 %v571
  %v802 = vpop.f32.mrf.mxu0
  %v803 = vadd.f32 %v489, %v802
  %v804 = vpop.f32.mrf.mxu0
  %805 = vmatprep.mubr.f32.mxu0 0.0
  %806 = vmatmul.mubr.f32.gmra.mxu0 %v574
  %v807 = vpop.f32.mrf.mxu0
  %v808 = vadd.f32 %v489, %v807
  %v809 = vpop.f32.mrf.mxu0
  %810 = vmatprep.mubr.f32.mxu0 0.0
  %811 = vmatmul.mubr.f32.gmra.mxu0 %v577
  %v812 = vpop.f32.mrf.mxu0
  %v813 = vadd.f32 %v489, %v812
  %v814 = vpop.f32.mrf.mxu0
  %815 = vmatprep.mubr.f32.mxu0 0.0
  %816 = vmatmul.mubr.f32.gmra.mxu0 %v580
  %v817 = vpop.f32.mrf.mxu0
  %v818 = vadd.f32 %v489, %v817
  %v819 = vpop.f32.mrf.mxu0
  %820 = vmatprep.mubr.f32.mxu0 0.0
  %821 = vmatmul.mubr.f32.gmra.mxu0 %v583
  %v822 = vpop.f32.mrf.mxu0
  %v823 = vadd.f32 %v489, %v822
  %v824 = vpop.f32.mrf.mxu0
  %825 = vmatprep.mubr.f32.mxu0 0.0
  %826 = vmatmul.mubr.f32.gmra.mxu0 %v586
  %v827 = vpop.f32.mrf.mxu0
  %v828 = vadd.f32 %v489, %v827
  %v829 = vpop.f32.mrf.mxu0
  %830 = vmatprep.mubr.f32.mxu0 0.0
  %831 = vmatmul.mubr.f32.gmra.mxu0 %v589
  %v832 = vpop.f32.mrf.mxu0
  %v833 = vadd.f32 %v489, %v832
  %v834 = vpop.f32.mrf.mxu0
  %835 = vmatprep.mubr.f32.mxu0 0.0
  %836 = vmatmul.mubr.f32.gmra.mxu0 %v592
  %v837 = vpop.f32.mrf.mxu0
  %v838 = vadd.f32 %v489, %v837
  %v839 = vpop.f32.mrf.mxu0
  %840 = vmatprep.mubr.f32.mxu0 0.0
  %841 = vmatmul.mubr.f32.gmra.mxu0 %v595
  %v842 = vpop.f32.mrf.mxu0
  %v843 = vadd.f32 %v489, %v842
  %v844 = vpop.f32.mrf.mxu0
  %845 = vmatprep.mubr.f32.mxu0 0.0
  %846 = vmatmul.mubr.f32.gmra.mxu0 %v598
  %v847 = vpop.f32.mrf.mxu0
  %v848 = vadd.f32 %v489, %v847
  %v849 = vpop.f32.mrf.mxu0
  %850 = vmatprep.mubr.f32.mxu0 0.0
  %851 = vmatmul.mubr.f32.gmra.mxu0 %v601
  %v852 = vpop.f32.mrf.mxu0
  %v853 = vadd.f32 %v489, %v852
  %v854 = vpop.f32.mrf.mxu0
  %855 = vmatprep.mubr.f32.mxu0 0.0
  %856 = vmatmul.mubr.f32.gmra.mxu0 %v604
  %v857 = vpop.f32.mrf.mxu0
  %v858 = vadd.f32 %v489, %v857
  %v859 = vpop.f32.mrf.mxu0
  %860 = vdwg.mxu0
  %v861 = vmax.f32 %v673, 0.0
  %v862 = vmax.f32 %v678, 0.0
  %v863 = vmax.f32 %v683, 0.0
  %v864 = vmax.f32 %v688, 0.0
  %v865 = vmax.f32 %v693, 0.0
  %v866 = vmax.f32 %v698, 0.0
  %v867 = vmax.f32 %v703, 0.0
  %v868 = vmax.f32 %v708, 0.0
  %v869 = vmax.f32 %v713, 0.0
  %v870 = vmax.f32 %v718, 0.0
  %v871 = vmax.f32 %v723, 0.0
  %v872 = vmax.f32 %v728, 0.0
  %v873 = vmax.f32 %v733, 0.0
  %v874 = vmax.f32 %v738, 0.0
  %v875 = vmax.f32 %v743, 0.0
  %v876 = vmax.f32 %v748, 0.0
  %v877 = vmax.f32 %v753, 0.0
  %v878 = vmax.f32 %v758, 0.0
  %v879 = vmax.f32 %v763, 0.0
  %v880 = vmax.f32 %v768, 0.0
  %v881 = vmax.f32 %v773, 0.0
  %v882 = vmax.f32 %v778, 0.0
  %v883 = vmax.f32 %v783, 0.0
  %v884 = vmax.f32 %v788, 0.0
  %v885 = vmax.f32 %v793, 0.0
  %v886 = vmax.f32 %v798, 0.0
  %v887 = vmax.f32 %v803, 0.0
  %v888 = vmax.f32 %v808, 0.0
  %v889 = vmax.f32 %v813, 0.0
  %v890 = vmax.f32 %v818, 0.0
  %v891 = vmax.f32 %v823, 0.0
  %v892 = vmax.f32 %v828, 0.0
  %v893 = vmax.f32 %v833, 0.0
  %v894 = vmax.f32 %v838, 0.0
  %v895 = vmax.f32 %v843, 0.0
  %v896 = vmax.f32 %v848, 0.0
  %v897 = vmax.f32 %v853, 0.0
  %v898 = vmax.f32 %v858, 0.0
  %v899 = vld [vmem:[%s5] sm:$0xff]
  %v900 = vld [vmem:[%s5 + $0x8] sm:$0xff]
  %v901 = vld [vmem:[%s5 + $0x10] sm:$0xff]
  %v902 = vld [vmem:[%s5 + $0x18] sm:$0xff]
  %v903 = vld [vmem:[%s6] sm:$0x1]
  %v905 = vlaneseq
  %v906 = vshrl.u32 %v905, 7
  %v907 = vsub.s32 0, %v906
  %v908 = vrot.slane %v903, %v907
  %v911 = vsel %vm491, %v861, 0
  %v914 = vsel %vm491, %v862, 0
  %v917 = vsel %vm491, %v863, 0
  %v920 = vsel %vm491, %v864, 0
  %v923 = vsel %vm491, %v865, 0
  %v926 = vsel %vm491, %v866, 0
  %v929 = vsel %vm491, %v867, 0
  %v932 = vsel %vm491, %v868, 0
  %v935 = vsel %vm491, %v869, 0
  %v938 = vsel %vm491, %v870, 0
  %v941 = vsel %vm491, %v871, 0
  %v944 = vsel %vm491, %v872, 0
  %v947 = vsel %vm491, %v873, 0
  %v950 = vsel %vm491, %v874, 0
  %v953 = vsel %vm491, %v875, 0
  %v956 = vsel %vm491, %v876, 0
  %v959 = vsel %vm491, %v877, 0
  %v962 = vsel %vm491, %v878, 0
  %v965 = vsel %vm491, %v879, 0
  %v968 = vsel %vm491, %v880, 0
  %v971 = vsel %vm491, %v881, 0
  %v974 = vsel %vm491, %v882, 0
  %v977 = vsel %vm491, %v883, 0
  %v980 = vsel %vm491, %v884, 0
  %v983 = vsel %vm491, %v885, 0
  %v986 = vsel %vm491, %v886, 0
  %v989 = vsel %vm491, %v887, 0
  %v992 = vsel %vm491, %v888, 0
  %v995 = vsel %vm491, %v889, 0
  %v998 = vsel %vm491, %v890, 0
  %v1001 = vsel %vm491, %v891, 0
  %v1004 = vsel %vm491, %v892, 0
  %v1007 = vsel %vm491, %v893, 0
  %v1010 = vsel %vm491, %v894, 0
  %v1013 = vsel %vm491, %v895, 0
  %v1016 = vsel %vm491, %v896, 0
  %v1019 = vsel %vm491, %v897, 0
  %v1022 = vsel %vm491, %v898, 0
  %1024 = vmatprep.subr.mxu0 0.0
  %1025 = vmatpush1.msra.mxu0 0.0
  %1026 = vmatprep.subr.mxu0 0.0
  %1027 = vmatpush1.msra.mxu0 0.0
  %1028 = vmatprep.subr.mxu0 0.0
  %1029 = vmatpush1.msra.mxu0 0.0
  %1030 = vmatprep.subr.mxu0 0.0
  %1031 = vmatpush1.msra.mxu0 0.0
  %1032 = vmatprep.subr.mxu0 0.0
  %1033 = vmatpush1.msra.mxu0 0.0
  %1034 = vmatprep.subr.mxu0 0.0
  %1035 = vmatpush1.msra.mxu0 0.0
  %1036 = vmatprep.subr.mxu0 0.0
  %1037 = vmatpush1.msra.mxu0 0.0
  %1038 = vmatprep.subr.mxu0 0.0
  %1039 = vmatpush1.msra.mxu0 0.0
  %1040 = vmatprep.subr.mxu0 0.0
  %1041 = vmatpush1.msra.mxu0 0.0
  %1042 = vmatprep.subr.mxu0 0.0
  %1043 = vmatpush1.msra.mxu0 0.0
  %1044 = vmatprep.subr.mxu0 0.0
  %1045 = vmatpush1.msra.mxu0 0.0
  %1046 = vmatprep.subr.mxu0 0.0
  %1047 = vmatpush1.msra.mxu0 0.0
  %1048 = vmatprep.subr.mxu0 0.0
  %1049 = vmatpush1.msra.mxu0 %v902
  %1050 = vmatprep.subr.mxu0 0.0
  %1051 = vmatpush1.msra.mxu0 %v901
  %1052 = vmatprep.subr.mxu0 0.0
  %1053 = vmatpush1.msra.mxu0 %v900
  %1054 = vmatprep.subr.mxu0 0.0
  %1055 = vmatpush1.msra.mxu0 %v899
  %1056 = vmatprep.subr.mxu0 0.0
  %1057 = vmatpush2.msra.mxu0 0.0
  %1058 = vmatprep.subr.mxu0 0.0
  %1059 = vmatpush2.msra.mxu0 0.0
  %1060 = vmatprep.subr.mxu0 0.0
  %1061 = vmatpush2.msra.mxu0 0.0
  %1062 = vmatprep.subr.mxu0 0.0
  %1063 = vmatpush2.msra.mxu0 0.0
  %1064 = vmatprep.subr.mxu0 0.0
  %1065 = vmatpush2.msra.mxu0 0.0
  %1066 = vmatprep.subr.mxu0 0.0
  %1067 = vmatpush2.msra.mxu0 0.0
  %1068 = vmatprep.subr.mxu0 0.0
  %1069 = vmatpush2.msra.mxu0 0.0
  %1070 = vmatprep.subr.mxu0 0.0
  %1071 = vmatpush2.msra.mxu0 0.0
  %1072 = vmatprep.subr.mxu0 0.0
  %1073 = vmatpush2.msra.mxu0 0.0
  %1074 = vmatprep.subr.mxu0 0.0
  %1075 = vmatpush2.msra.mxu0 0.0
  %1076 = vmatprep.subr.mxu0 0.0
  %1077 = vmatpush2.msra.mxu0 0.0
  %1078 = vmatprep.subr.mxu0 0.0
  %1079 = vmatpush2.msra.mxu0 0.0
  %1080 = vmatprep.subr.mxu0 0.0
  %1081 = vmatpush2.msra.mxu0 0.0
  %1082 = vmatprep.subr.mxu0 0.0
  %1083 = vmatpush2.msra.mxu0 0.0
  %1084 = vmatprep.subr.mxu0 0.0
  %1085 = vmatpush2.msra.mxu0 0.0
  %1086 = vmatprep.subr.mxu0 0.0
  %1087 = vmatpush2.msra.mxu0 0.0
  %1088 = vmatprep.mubr.f32.mxu0 0.0
  %1089 = vmatmul.mubr.f32.gmra.mxu0 %v911
  %v1090 = vpop.f32.mrf.mxu0
  %v1091 = vadd.f32 %v908, %v1090
  %v1092 = vpop.f32.mrf.mxu0
  %1093 = vmatprep.mubr.f32.mxu0 0.0
  %1094 = vmatmul.mubr.f32.gmra.mxu0 %v914
  %v1095 = vpop.f32.mrf.mxu0
  %v1096 = vadd.f32 %v908, %v1095
  %v1097 = vpop.f32.mrf.mxu0
  %1098 = vmatprep.mubr.f32.mxu0 0.0
  %1099 = vmatmul.mubr.f32.gmra.mxu0 %v917
  %v1100 = vpop.f32.mrf.mxu0
  %v1101 = vadd.f32 %v908, %v1100
  %v1102 = vpop.f32.mrf.mxu0
  %1103 = vmatprep.mubr.f32.mxu0 0.0
  %1104 = vmatmul.mubr.f32.gmra.mxu0 %v920
  %v1105 = vpop.f32.mrf.mxu0
  %v1106 = vadd.f32 %v908, %v1105
  %v1107 = vpop.f32.mrf.mxu0
  %1108 = vmatprep.mubr.f32.mxu0 0.0
  %1109 = vmatmul.mubr.f32.gmra.mxu0 %v923
  %v1110 = vpop.f32.mrf.mxu0
  %v1111 = vadd.f32 %v908, %v1110
  %v1112 = vpop.f32.mrf.mxu0
  %1113 = vmatprep.mubr.f32.mxu0 0.0
  %1114 = vmatmul.mubr.f32.gmra.mxu0 %v926
  %v1115 = vpop.f32.mrf.mxu0
  %v1116 = vadd.f32 %v908, %v1115
  %v1117 = vpop.f32.mrf.mxu0
  %1118 = vmatprep.mubr.f32.mxu0 0.0
  %1119 = vmatmul.mubr.f32.gmra.mxu0 %v929
  %v1120 = vpop.f32.mrf.mxu0
  %v1121 = vadd.f32 %v908, %v1120
  %v1122 = vpop.f32.mrf.mxu0
  %1123 = vmatprep.mubr.f32.mxu0 0.0
  %1124 = vmatmul.mubr.f32.gmra.mxu0 %v932
  %v1125 = vpop.f32.mrf.mxu0
  %v1126 = vadd.f32 %v908, %v1125
  %v1127 = vpop.f32.mrf.mxu0
  %1128 = vmatprep.mubr.f32.mxu0 0.0
  %1129 = vmatmul.mubr.f32.gmra.mxu0 %v935
  %v1130 = vpop.f32.mrf.mxu0
  %v1131 = vadd.f32 %v908, %v1130
  %v1132 = vpop.f32.mrf.mxu0
  %1133 = vmatprep.mubr.f32.mxu0 0.0
  %1134 = vmatmul.mubr.f32.gmra.mxu0 %v938
  %v1135 = vpop.f32.mrf.mxu0
  %v1136 = vadd.f32 %v908, %v1135
  %v1137 = vpop.f32.mrf.mxu0
  %1138 = vmatprep.mubr.f32.mxu0 0.0
  %1139 = vmatmul.mubr.f32.gmra.mxu0 %v941
  %v1140 = vpop.f32.mrf.mxu0
  %v1141 = vadd.f32 %v908, %v1140
  %v1142 = vpop.f32.mrf.mxu0
  %1143 = vmatprep.mubr.f32.mxu0 0.0
  %1144 = vmatmul.mubr.f32.gmra.mxu0 %v944
  %v1145 = vpop.f32.mrf.mxu0
  %v1146 = vadd.f32 %v908, %v1145
  %v1147 = vpop.f32.mrf.mxu0
  %1148 = vmatprep.mubr.f32.mxu0 0.0
  %1149 = vmatmul.mubr.f32.gmra.mxu0 %v947
  %v1150 = vpop.f32.mrf.mxu0
  %v1151 = vadd.f32 %v908, %v1150
  %v1152 = vpop.f32.mrf.mxu0
  %1153 = vmatprep.mubr.f32.mxu0 0.0
  %1154 = vmatmul.mubr.f32.gmra.mxu0 %v950
  %v1155 = vpop.f32.mrf.mxu0
  %v1156 = vadd.f32 %v908, %v1155
  %v1157 = vpop.f32.mrf.mxu0
  %1158 = vmatprep.mubr.f32.mxu0 0.0
  %1159 = vmatmul.mubr.f32.gmra.mxu0 %v953
  %v1160 = vpop.f32.mrf.mxu0
  %v1161 = vadd.f32 %v908, %v1160
  %v1162 = vpop.f32.mrf.mxu0
  %1163 = vmatprep.mubr.f32.mxu0 0.0
  %1164 = vmatmul.mubr.f32.gmra.mxu0 %v956
  %v1165 = vpop.f32.mrf.mxu0
  %v1166 = vadd.f32 %v908, %v1165
  %v1167 = vpop.f32.mrf.mxu0
  %1168 = vmatprep.mubr.f32.mxu0 0.0
  %1169 = vmatmul.mubr.f32.gmra.mxu0 %v959
  %v1170 = vpop.f32.mrf.mxu0
  %v1171 = vadd.f32 %v908, %v1170
  %v1172 = vpop.f32.mrf.mxu0
  %1173 = vmatprep.mubr.f32.mxu0 0.0
  %1174 = vmatmul.mubr.f32.gmra.mxu0 %v962
  %v1175 = vpop.f32.mrf.mxu0
  %v1176 = vadd.f32 %v908, %v1175
  %v1177 = vpop.f32.mrf.mxu0
  %1178 = vmatprep.mubr.f32.mxu0 0.0
  %1179 = vmatmul.mubr.f32.gmra.mxu0 %v965
  %v1180 = vpop.f32.mrf.mxu0
  %v1181 = vadd.f32 %v908, %v1180
  %v1182 = vpop.f32.mrf.mxu0
  %1183 = vmatprep.mubr.f32.mxu0 0.0
  %1184 = vmatmul.mubr.f32.gmra.mxu0 %v968
  %v1185 = vpop.f32.mrf.mxu0
  %v1186 = vadd.f32 %v908, %v1185
  %v1187 = vpop.f32.mrf.mxu0
  %1188 = vmatprep.mubr.f32.mxu0 0.0
  %1189 = vmatmul.mubr.f32.gmra.mxu0 %v971
  %v1190 = vpop.f32.mrf.mxu0
  %v1191 = vadd.f32 %v908, %v1190
  %v1192 = vpop.f32.mrf.mxu0
  %1193 = vmatprep.mubr.f32.mxu0 0.0
  %1194 = vmatmul.mubr.f32.gmra.mxu0 %v974
  %v1195 = vpop.f32.mrf.mxu0
  %v1196 = vadd.f32 %v908, %v1195
  %v1197 = vpop.f32.mrf.mxu0
  %1198 = vmatprep.mubr.f32.mxu0 0.0
  %1199 = vmatmul.mubr.f32.gmra.mxu0 %v977
  %v1200 = vpop.f32.mrf.mxu0
  %v1201 = vadd.f32 %v908, %v1200
  %v1202 = vpop.f32.mrf.mxu0
  %1203 = vmatprep.mubr.f32.mxu0 0.0
  %1204 = vmatmul.mubr.f32.gmra.mxu0 %v980
  %v1205 = vpop.f32.mrf.mxu0
  %v1206 = vadd.f32 %v908, %v1205
  %v1207 = vpop.f32.mrf.mxu0
  %1208 = vmatprep.mubr.f32.mxu0 0.0
  %1209 = vmatmul.mubr.f32.gmra.mxu0 %v983
  %v1210 = vpop.f32.mrf.mxu0
  %v1211 = vadd.f32 %v908, %v1210
  %v1212 = vpop.f32.mrf.mxu0
  %1213 = vmatprep.mubr.f32.mxu0 0.0
  %1214 = vmatmul.mubr.f32.gmra.mxu0 %v986
  %v1215 = vpop.f32.mrf.mxu0
  %v1216 = vadd.f32 %v908, %v1215
  %v1217 = vpop.f32.mrf.mxu0
  %1218 = vmatprep.mubr.f32.mxu0 0.0
  %1219 = vmatmul.mubr.f32.gmra.mxu0 %v989
  %v1220 = vpop.f32.mrf.mxu0
  %v1221 = vadd.f32 %v908, %v1220
  %v1222 = vpop.f32.mrf.mxu0
  %1223 = vmatprep.mubr.f32.mxu0 0.0
  %1224 = vmatmul.mubr.f32.gmra.mxu0 %v992
  %v1225 = vpop.f32.mrf.mxu0
  %v1226 = vadd.f32 %v908, %v1225
  %v1227 = vpop.f32.mrf.mxu0
  %1228 = vmatprep.mubr.f32.mxu0 0.0
  %1229 = vmatmul.mubr.f32.gmra.mxu0 %v995
  %v1230 = vpop.f32.mrf.mxu0
  %v1231 = vadd.f32 %v908, %v1230
  %v1232 = vpop.f32.mrf.mxu0
  %1233 = vmatprep.mubr.f32.mxu0 0.0
  %1234 = vmatmul.mubr.f32.gmra.mxu0 %v998
  %v1235 = vpop.f32.mrf.mxu0
  %v1236 = vadd.f32 %v908, %v1235
  %v1237 = vpop.f32.mrf.mxu0
  %1238 = vmatprep.mubr.f32.mxu0 0.0
  %1239 = vmatmul.mubr.f32.gmra.mxu0 %v1001
  %v1240 = vpop.f32.mrf.mxu0
  %v1241 = vadd.f32 %v908, %v1240
  %v1242 = vpop.f32.mrf.mxu0
  %1243 = vmatprep.mubr.f32.mxu0 0.0
  %1244 = vmatmul.mubr.f32.gmra.mxu0 %v1004
  %v1245 = vpop.f32.mrf.mxu0
  %v1246 = vadd.f32 %v908, %v1245
  %v1247 = vpop.f32.mrf.mxu0
  %1248 = vmatprep.mubr.f32.mxu0 0.0
  %1249 = vmatmul.mubr.f32.gmra.mxu0 %v1007
  %v1250 = vpop.f32.mrf.mxu0
  %v1251 = vadd.f32 %v908, %v1250
  %v1252 = vpop.f32.mrf.mxu0
  %1253 = vmatprep.mubr.f32.mxu0 0.0
  %1254 = vmatmul.mubr.f32.gmra.mxu0 %v1010
  %v1255 = vpop.f32.mrf.mxu0
  %v1256 = vadd.f32 %v908, %v1255
  %v1257 = vpop.f32.mrf.mxu0
  %1258 = vmatprep.mubr.f32.mxu0 0.0
  %1259 = vmatmul.mubr.f32.gmra.mxu0 %v1013
  %v1260 = vpop.f32.mrf.mxu0
  %v1261 = vadd.f32 %v908, %v1260
  %v1262 = vpop.f32.mrf.mxu0
  %1263 = vmatprep.mubr.f32.mxu0 0.0
  %1264 = vmatmul.mubr.f32.gmra.mxu0 %v1016
  %v1265 = vpop.f32.mrf.mxu0
  %v1266 = vadd.f32 %v908, %v1265
  %v1267 = vpop.f32.mrf.mxu0
  %1268 = vmatprep.mubr.f32.mxu0 0.0
  %1269 = vmatmul.mubr.f32.gmra.mxu0 %v1019
  %v1270 = vpop.f32.mrf.mxu0
  %v1271 = vadd.f32 %v908, %v1270
  %v1272 = vpop.f32.mrf.mxu0
  %1273 = vmatprep.mubr.f32.mxu0 0.0
  %1274 = vmatmul.mubr.f32.gmra.mxu0 %v1022
  %v1275 = vpop.f32.mrf.mxu0
  %v1276 = vadd.f32 %v908, %v1275
  %v1277 = vpop.f32.mrf.mxu0
  %1278 = vdwg.mxu0
  %vm1279 = vcmask 31744
  %1280 = vst.msk [vmem:[%s7] sm:$0xff] %vm1279, %v1091
  %1281 = vst.msk [vmem:[%s7 + $0x8] sm:$0xff] %vm1279, %v1096
  %1282 = vst.msk [vmem:[%s7 + $0x10] sm:$0xff] %vm1279, %v1101
  %1283 = vst.msk [vmem:[%s7 + $0x18] sm:$0xff] %vm1279, %v1106
  %1284 = vst.msk [vmem:[%s7 + $0x20] sm:$0xff] %vm1279, %v1111
  %1285 = vst.msk [vmem:[%s7 + $0x28] sm:$0xff] %vm1279, %v1116
  %1286 = vst.msk [vmem:[%s7 + $0x30] sm:$0xff] %vm1279, %v1121
  %1287 = vst.msk [vmem:[%s7 + $0x38] sm:$0xff] %vm1279, %v1126
  %1288 = vst.msk [vmem:[%s7 + $0x40] sm:$0xff] %vm1279, %v1131
  %1289 = vst.msk [vmem:[%s7 + $0x48] sm:$0xff] %vm1279, %v1136
  %1290 = vst.msk [vmem:[%s7 + $0x50] sm:$0xff] %vm1279, %v1141
  %1291 = vst.msk [vmem:[%s7 + $0x58] sm:$0xff] %vm1279, %v1146
  %1292 = vst.msk [vmem:[%s7 + $0x60] sm:$0xff] %vm1279, %v1151
  %1293 = vst.msk [vmem:[%s7 + $0x68] sm:$0xff] %vm1279, %v1156
  %1294 = vst.msk [vmem:[%s7 + $0x70] sm:$0xff] %vm1279, %v1161
  %1295 = vst.msk [vmem:[%s7 + $0x78] sm:$0xff] %vm1279, %v1166
  %1296 = vst.msk [vmem:[%s7 + $0x80] sm:$0xff] %vm1279, %v1171
  %1297 = vst.msk [vmem:[%s7 + $0x88] sm:$0xff] %vm1279, %v1176
  %1298 = vst.msk [vmem:[%s7 + $0x90] sm:$0xff] %vm1279, %v1181
  %1299 = vst.msk [vmem:[%s7 + $0x98] sm:$0xff] %vm1279, %v1186
  %1300 = vst.msk [vmem:[%s7 + $0xa0] sm:$0xff] %vm1279, %v1191
  %1301 = vst.msk [vmem:[%s7 + $0xa8] sm:$0xff] %vm1279, %v1196
  %1302 = vst.msk [vmem:[%s7 + $0xb0] sm:$0xff] %vm1279, %v1201
  %1303 = vst.msk [vmem:[%s7 + $0xb8] sm:$0xff] %vm1279, %v1206
  %1304 = vst.msk [vmem:[%s7 + $0xc0] sm:$0xff] %vm1279, %v1211
  %1305 = vst.msk [vmem:[%s7 + $0xc8] sm:$0xff] %vm1279, %v1216
  %1306 = vst.msk [vmem:[%s7 + $0xd0] sm:$0xff] %vm1279, %v1221
  %1307 = vst.msk [vmem:[%s7 + $0xd8] sm:$0xff] %vm1279, %v1226
  %1308 = vst.msk [vmem:[%s7 + $0xe0] sm:$0xff] %vm1279, %v1231
  %1309 = vst.msk [vmem:[%s7 + $0xe8] sm:$0xff] %vm1279, %v1236
  %1310 = vst.msk [vmem:[%s7 + $0xf0] sm:$0xff] %vm1279, %v1241
  %1311 = vst.msk [vmem:[%s7 + $0xf8] sm:$0xff] %vm1279, %v1246
  %1312 = vst.msk [vmem:[%s7 + $0x100] sm:$0xff] %vm1279, %v1251
  %1313 = vst.msk [vmem:[%s7 + $0x108] sm:$0xff] %vm1279, %v1256
  %1314 = vst.msk [vmem:[%s7 + $0x110] sm:$0xff] %vm1279, %v1261
  %1315 = vst.msk [vmem:[%s7 + $0x118] sm:$0xff] %vm1279, %v1266
  %1316 = vst.msk [vmem:[%s7 + $0x120] sm:$0xff] %vm1279, %v1271
  %1317 = vst.msk [vmem:[%s7 + $0x128] sm:$0xff] %vm1279, %v1276
  // Predicated region
  $region30: #{network_forward.1} parent=0 // pred_check
    _
  $region31: #{network_forward.1} parent=0 // pred_check_branch
    %1319 = sbr.rel (0) target = $region33
  $region32: #{network_forward.1} parent=0 // pred_region
    _
  $region33: #{network_forward.1} parent=0 // pred_fallthru
    _
  // Predicated region
  $region34: #{network_forward.1} parent=0 // pred_check
    _
  $region35: #{network_forward.1} parent=0 // pred_check_branch
    %1321 = sbr.rel (0) target = $region37
  $region36: #{network_forward.1} parent=0 // pred_region
    _
  $region37: #{network_forward.1} parent=0 // pred_fallthru
    _

</llo_original>
